<compile_context>
chip_gen: v7x
topology: tpu7x:2x2x1
jax: 0.10.0
libtpu: 0.0.40
codegen_flags: <defaults>
</compile_context>

<pallas_src>
import functools

import jax
import jax.numpy as jnp
from jax import lax
from jax.experimental import pallas as pl
from jax.experimental.pallas import tpu as pltpu


# ---------------------------------------------------------------------------
# Weight preparation: PyTorch nn.LSTM layout -> fused/transposed kernel layout
# ---------------------------------------------------------------------------
def prepare_weights(w_ih_pt, w_hh_pt, dtype=jnp.bfloat16):
    """PyTorch weight_ih_l0 (4H, I) / weight_hh_l0 (4H, H) with gate rows
    [i, f, g, o] -> fused, transposed (I, 4H) / (H, 4H) with kernel gate order
    [i, f, o, g] (three sigmoid gates contiguous, tanh gate last)."""
    def rearrange(w):
        wi, wf, wg, wo = jnp.split(w, 4, axis=0)
        return jnp.concatenate([wi, wf, wo, wg], axis=0).T.astype(dtype)
    return rearrange(w_ih_pt), rearrange(w_hh_pt)


def _divisor_leq(n, cap):
    d = max(1, min(n, cap))
    while n % d:
        d -= 1
    return d


def _pick_vmem_limit():
    """Generation-aware scoped-VMEM limit: ~75% of per-core VMEM capacity
    (v7x 64 MiB -> 48 MiB, v5e/v6e 128 MiB -> 96 MiB), safe fallback 48 MiB."""
    try:
        cap = pltpu.get_tpu_info().vmem_capacity_bytes
        return min(int(cap * 3 // 4), 100 * 1024 * 1024)
    except Exception:
        return 48 * 1024 * 1024


def _pick_batch_tile(b_pad, cap):
    """Largest multiple-of-8 divisor of b_pad that is <= cap; when B >= 16,
    also guarantee >= 2 batch tiles so v7x megacore sharding has work."""
    units = b_pad // 8
    cap_units = max(1, cap // 8)
    if b_pad >= 16:
        cap_units = max(1, min(cap_units, units // 2))
    return 8 * _divisor_leq(units, cap_units)


# ---------------------------------------------------------------------------
# Kernel 1: hoisted input projection  gates_x = (T*B, I) @ (I, 4H)
# ---------------------------------------------------------------------------
def _proj_kernel(x_ref, w_ref, o_ref):
    o_ref[...] = jnp.dot(x_ref[...], w_ref[...],
                         preferred_element_type=jnp.float32).astype(o_ref.dtype)


def _input_projection(x2d, w_ih, out_dtype, vmem_limit, *, tm=256, tn=512):
    M, I = x2d.shape
    H4 = w_ih.shape[-1]
    tm = min(tm, M)
    tn = _divisor_leq(H4, tn)
    # TODO(synk): add a K grid axis + f32 VMEM accumulator for very large I.
    return pl.pallas_call(
        _proj_kernel,
        out_shape=jax.ShapeDtypeStruct((M, H4), out_dtype),
        grid_spec=pltpu.PrefetchScalarGridSpec(
            num_scalar_prefetch=0,
            grid=(pl.cdiv(M, tm), H4 // tn),
            in_specs=[
                pl.BlockSpec((tm, I), lambda m, n: (m, 0)),
                pl.BlockSpec((I, tn), lambda m, n: (0, n)),
            ],
            out_specs=pl.BlockSpec((tm, tn), lambda m, n: (m, n)),
        ),
        compiler_params=pltpu.CompilerParams(
            dimension_semantics=("parallel", "parallel"),
            vmem_limit_bytes=vmem_limit,
        ),
    )(x2d, w_ih)


# ---------------------------------------------------------------------------
# Kernel 2: sequential recurrence, TT timesteps per grid step
# ---------------------------------------------------------------------------
def _lstm_recurrent_kernel(gx_ref, whh_ref, h0_ref, c0_ref,
                           out_ref, cn_ref, h_sc, c_sc, *, unroll):
    tc = pl.program_id(1)            # time-chunk index (inner, "arbitrary" axis)
    H = whh_ref.shape[0]
    tt = gx_ref.shape[0]

    @pl.when(tc == 0)
    def _():
        h_sc[...] = h0_ref[...].astype(jnp.float32)
        c_sc[...] = c0_ref[...].astype(jnp.float32)

    w_hh = whh_ref[...]              # (H, 4H), VMEM-resident for the chunk

    def step(i, carry):
        h, c = carry
        # Single fused recurrent matmul: (tb, H) @ (H, 4H), f32 accumulation.
        gates = (gx_ref[i].astype(jnp.float32)
                 + jnp.dot(h.astype(w_hh.dtype), w_hh,
                           preferred_element_type=jnp.float32))
        # sigmoid(x) = 0.5*tanh(0.5*x)+0.5 : one EUP transcendental per lane
        # for the contiguous [i | f | o] slice instead of exp + reciprocal.
        sig = 0.5 * jnp.tanh(0.5 * gates[:, :3 * H]) + 0.5
        i_g = sig[:, :H]
        f_g = sig[:, H:2 * H]
        o_g = sig[:, 2 * H:]
        g_g = jnp.tanh(gates[:, 3 * H:])
        c_new = f_g * c + i_g * g_g
        h_new = o_g * jnp.tanh(c_new)
        out_ref[i] = h_new.astype(out_ref.dtype)
        return h_new, c_new

    # h/c carried in registers across the chunk; scratch only hands the carry
    # to the next grid step.
    # TODO(synk): for very large tb*H, carry h/c through VMEM scratch per step.
    h, c = lax.fori_loop(0, tt, step, (h_sc[...], c_sc[...]), unroll=unroll)
    h_sc[...] = h
    c_sc[...] = c

    @pl.when(tc == pl.num_programs(1) - 1)
    def _():
        cn_ref[...] = c.astype(cn_ref.dtype)


def _recurrent_call(T, Bp, H, tt, tb, gx_dtype, w_dtype, vmem_limit, unroll,
                    single_buffer_w):
    H4 = 4 * H
    if single_buffer_w:
        # Constant-index weight block: single-buffer it (no need to double-buffer
        # a block whose index never changes).
        whh_spec = pl.BlockSpec((H, H4), lambda b, t: (0, 0),
                                pipeline_mode=pl.Buffered(1))
    else:
        whh_spec = pl.BlockSpec((H, H4), lambda b, t: (0, 0))
    kernel = functools.partial(_lstm_recurrent_kernel, unroll=unroll)
    return pl.pallas_call(
        kernel,
        out_shape=(
            jax.ShapeDtypeStruct((T, Bp, H), jnp.float32),
            jax.ShapeDtypeStruct((Bp, H), jnp.float32),
        ),
        grid_spec=pltpu.PrefetchScalarGridSpec(
            num_scalar_prefetch=0,
            grid=(Bp // tb, T // tt),
            in_specs=[
                pl.BlockSpec((tt, tb, H4), lambda b, t: (t, b, 0)),
                whh_spec,
                pl.BlockSpec((tb, H), lambda b, t: (b, 0)),
                pl.BlockSpec((tb, H), lambda b, t: (b, 0)),
            ],
            out_specs=[
                pl.BlockSpec((tt, tb, H), lambda b, t: (t, b, 0)),
                pl.BlockSpec((tb, H), lambda b, t: (b, 0)),
            ],
            scratch_shapes=[
                pltpu.VMEM((tb, H), jnp.float32),   # h carry across chunks
                pltpu.VMEM((tb, H), jnp.float32),   # c carry across chunks
            ],
        ),
        compiler_params=pltpu.CompilerParams(
            dimension_semantics=("parallel", "arbitrary"),
            vmem_limit_bytes=vmem_limit,
        ),
    )


# ---------------------------------------------------------------------------
# Wrapper: forward pass of RNNs with rnn_type='LSTM'
# ---------------------------------------------------------------------------
def lstm_forward(x, hidden, w_ih_pt, w_hh_pt, *,
                 compute_dtype=jnp.bfloat16, time_chunk=8, batch_tile=256):
    """x: (T, B, I); hidden = (h0, c0), each (1, B, H);
    w_ih_pt: (4H, I), w_hh_pt: (4H, H) in PyTorch nn.LSTM layout (bias=False).
    Returns (output (T, B, H), (h_n (1, B, H), c_n (1, B, H)))."""
    h0, c0 = hidden
    T, B, I = x.shape
    H = h0.shape[-1]
    H4 = 4 * H
    vmem_limit = _pick_vmem_limit()

    w_ih, w_hh = prepare_weights(w_ih_pt, w_hh_pt, compute_dtype)

    # Pad batch up to a multiple of 8 (sublane alignment) instead of shrinking
    # the batch tile below a vreg row.
    B_pad = ((B + 7) // 8) * 8
    if B_pad != B:
        pad = B_pad - B
        x = jnp.pad(x, ((0, 0), (0, pad), (0, 0)))
        h0b = jnp.pad(h0[0], ((0, pad), (0, 0)))
        c0b = jnp.pad(c0[0], ((0, pad), (0, 0)))
    else:
        h0b, c0b = h0[0], c0[0]

    # 1) hoisted, time-independent input projection (one big (T*B, I) GEMM),
    #    stored in compute_dtype (bf16 halves the dominant HBM stream).
    gates_x = _input_projection(
        x.reshape(T * B_pad, I).astype(compute_dtype), w_ih,
        compute_dtype, vmem_limit).reshape(T, B_pad, H4)

    # 2) sequential recurrence.
    tt = _divisor_leq(T, time_chunk)
    # TODO(synk): handle a ragged final time chunk via masking instead of
    # shrinking tt for awkward T.
    tb = _pick_batch_tile(B_pad, batch_tile)
    # Fully unroll only while live h/c/gates fit comfortably in the 64-vreg file.
    unroll = (tb * H) <= 64 * 128

    try:
        out, c_n = _recurrent_call(T, B_pad, H, tt, tb, compute_dtype,
                                   compute_dtype, vmem_limit, unroll,
                                   single_buffer_w=True)(gates_x, w_hh, h0b, c0b)
    except Exception:
        # Fallback if pipeline_mode=pl.Buffered(1) is not supported.
        out, c_n = _recurrent_call(T, B_pad, H, tt, tb, compute_dtype,
                                   compute_dtype, vmem_limit, unroll,
                                   single_buffer_w=False)(gates_x, w_hh, h0b, c0b)

    out = out[:, :B]
    c_n = c_n[:B]
    # h_n is just the last timestep of the output stream.
    h_n = out[T - 1][None]
    return out, (h_n, c_n[None])


# ---------------------------------------------------------------------------
# Pure-JAX reference (matches PyTorch nn.LSTM, bias=False, 1 layer)
# ---------------------------------------------------------------------------
def lstm_reference(x, hidden, w_ih_pt, w_hh_pt):
    h0, c0 = hidden

    def step(carry, x_t):
        h, c = carry
        gates = x_t @ w_ih_pt.T + h @ w_hh_pt.T
        i, f, g, o = jnp.split(gates, 4, axis=-1)
        i = jax.nn.sigmoid(i)
        f = jax.nn.sigmoid(f)
        g = jnp.tanh(g)
        o = jax.nn.sigmoid(o)
        c_new = f * c + i * g
        h_new = o * jnp.tanh(c_new)
        return (h_new, c_new), h_new

    (h_n, c_n), out = lax.scan(step, (h0[0], c0[0]), x)
    return out, (h_n[None], c_n[None])


if __name__ == "__main__":
    key = jax.random.PRNGKey(0)

    def make_case(key, T, B, I, H):
        kx, kh, kc, kwi, kwh = jax.random.split(key, 5)
        x = jax.random.normal(kx, (T, B, I), dtype=jnp.float32)
        h0 = jax.random.normal(kh, (1, B, H), dtype=jnp.float32)
        c0 = jax.random.normal(kc, (1, B, H), dtype=jnp.float32)
        scale = 1.0 / jnp.sqrt(jnp.float32(H))
        w_ih = jax.random.uniform(kwi, (4 * H, I), jnp.float32, -scale, scale)
        w_hh = jax.random.uniform(kwh, (4 * H, H), jnp.float32, -scale, scale)
        return x, (h0, c0), w_ih, w_hh

    # Case 1: hardware-aligned shapes (B multiple of 8, H / 4H multiples of 128).
    k1, k2 = jax.random.split(key)
    x, hid, w_ih, w_hh = make_case(k1, T=16, B=8, I=128, H=128)
    out_ref, (h_ref, c_ref) = lstm_reference(x, hid, w_ih, w_hh)

    # f32 matmul inputs: tight check.
    out, (h_n, c_n) = lstm_forward(x, hid, w_ih, w_hh, compute_dtype=jnp.float32)
    jax.block_until_ready((out, h_n, c_n))
    assert jnp.allclose(out, out_ref, atol=1e-3, rtol=1e-3)
    assert jnp.allclose(h_n, h_ref, atol=1e-3, rtol=1e-3)
    assert jnp.allclose(c_n, c_ref, atol=1e-3, rtol=1e-3)

    # bf16 matmul inputs (default), f32 accumulation / state: loose check.
    out_bf, (h_bf, c_bf) = lstm_forward(x, hid, w_ih, w_hh)
    jax.block_until_ready((out_bf, h_bf, c_bf))
    assert jnp.allclose(out_bf, out_ref, atol=5e-2, rtol=5e-2)
    assert jnp.allclose(c_bf, c_ref, atol=5e-2, rtol=5e-2)

    # Case 2: ragged batch / time (exercises batch padding + tt divisor path).
    x2, hid2, w_ih2, w_hh2 = make_case(k2, T=12, B=12, I=96, H=128)
    out_ref2, (h_ref2, c_ref2) = lstm_reference(x2, hid2, w_ih2, w_hh2)
    out2, (h_n2, c_n2) = lstm_forward(x2, hid2, w_ih2, w_hh2)
    jax.block_until_ready((out2, h_n2, c_n2))
    assert jnp.allclose(out2, out_ref2, atol=5e-2, rtol=5e-2)
    assert jnp.allclose(c_n2, c_ref2, atol=5e-2, rtol=5e-2)

    print("KERNEL_OK")
</pallas_src>

<mosaic_0001>
module attributes {stable_mosaic.version = 11 : i64} {
  func.func @_proj_kernel(%arg0: i32, %arg1: i32, %arg2: memref<128x128xf32, #tpu.memory_space<vmem>>, %arg3: memref<128x512xf32, #tpu.memory_space<vmem>>, %arg4: memref<128x512xf32, #tpu.memory_space<vmem>>) attributes {dimension_semantics = [#tpu.dimension_semantics<parallel>, #tpu.dimension_semantics<parallel>], iteration_bounds = array<i64: 1, 1>, scalar_prefetch = 0 : i64, scratch_operands = 0 : i64, tpu.core_type = #tpu.core_type<tc>, window_params = [{transform_indices = @transform_0, window_bounds = array<i64: 128, 128>}, {transform_indices = @transform_1, window_bounds = array<i64: 128, 512>}, {transform_indices = @transform_2, window_bounds = array<i64: 128, 512>}]} {
    %c0 = arith.constant 0 : index
    %c0_0 = arith.constant 0 : index
    %0 = vector.load %arg2[%c0, %c0_0] : memref<128x128xf32, #tpu.memory_space<vmem>>, vector<128x128xf32>
    %c0_1 = arith.constant 0 : index
    %c0_2 = arith.constant 0 : index
    %1 = vector.load %arg3[%c0_1, %c0_2] : memref<128x512xf32, #tpu.memory_space<vmem>>, vector<128x512xf32>
    %cst = arith.constant dense<0.000000e+00> : vector<128x512xf32>
    %2 = tpu.matmul %0, %1, %cst {dimension_numbers = #tpu.dot_dimension_numbers<[1], [0], [0], [1], [0, 0, 1, 1], [], []>} : vector<128x128xf32>, vector<128x512xf32>, vector<128x512xf32> -> vector<128x512xf32>
    %c0_3 = arith.constant 0 : index
    %c0_4 = arith.constant 0 : index
    %3 = vector.load %arg4[%c0_3, %c0_4] : memref<128x512xf32, #tpu.memory_space<vmem>>, vector<128x512xf32>
    tpu.vector_store %arg4[%c0_3, %c0_4], %2 {strides = array<i32>} : memref<128x512xf32, #tpu.memory_space<vmem>>, vector<128x512xf32>,
    return
  }
  func.func @transform_0(%arg0: i32, %arg1: i32) -> (i32, i32) {
    %c0_i32 = arith.constant 0 : i32
    %c0_i32_0 = arith.constant 0 : i32
    return %arg0, %c0_i32 : i32, i32
  }
  func.func @transform_1(%arg0: i32, %arg1: i32) -> (i32, i32) {
    %c0_i32 = arith.constant 0 : i32
    %c0_i32_0 = arith.constant 0 : i32
    return %c0_i32, %arg1 : i32, i32
  }
  func.func @transform_2(%arg0: i32, %arg1: i32) -> (i32, i32) {
    %c0_i32 = arith.constant 0 : i32
    return %arg0, %arg1 : i32, i32
  }
}

</mosaic_0001>

<llo_original>
// kernel: tpu_custom_call.1
$region0: #{tpu_custom_call.1}
  #allocation0 [shape = 'u32[]', space=smem, size = 0x4, offset = 0x4, fixed_abs, tag = 'smem constant byte address 0x4 - core index']
  #allocation1 [shape = 'u32[144,128]{1,0:T(1,128)}', space=vmem, size = 0x12000, scoped, tag = 'internal scratch']
  %s0 = inlined_call_operand.hbm [shape: f32[128,128], index: 0, kind: input, shape index: {}]
  %s1 = inlined_call_operand.hbm [shape: f32[128,512], index: 1, kind: input, shape index: {}]
  %s2 = inlined_call_operand.hbm [shape: f32[128,512], index: 2, kind: output, shape index: {}]
  %s3 = sld [smem:[#allocation0]]
  $region26: #{tpu_custom_call.1} parent=0
    _
  %s5 = ssub.s32 1, %s3
  %s6 = scalar_select 0, %s5, %s3
  $region1: #{tpu_custom_call.1} parent=0
    #allocation2 [shape = 'u8[65536]{0}', space=vmem, size = 0x10000, scoped, tag = 'input window, operand 0, single buffered']
    #allocation3 [shape = 's32[1]{0}', space=sflag, size = 0x4, scoped, tag = 'scoped memory for tpu_custom_call.1']
    #allocation4 [shape = 's32[1]{0}', space=sflag, size = 0x4, scoped, tag = 'scoped memory for tpu_custom_call.1']
    #allocation5 [shape = 'u8[262144]{0}', space=vmem, size = 0x40000, scoped, tag = 'input window, operand 1, single buffered']
    #allocation6 [shape = 's32[1]{0}', space=sflag, size = 0x4, scoped, tag = 'scoped memory for tpu_custom_call.1']
    #allocation7 [shape = 'u8[262144]{0}', space=vmem, size = 0x40000, scoped, tag = 'output window, operand 0, single buffered']
    %7 = vsyncpa [#allocation3], 0
    %8 = vsyncpa [#allocation6], 0
    %9 = vsyncpa [#allocation4], 0
    // Predicated region
    $region2: #{tpu_custom_call.1} parent=1 // pred_check
      _
    $region3: #{tpu_custom_call.1} parent=1 // pred_check_branch
      %11 = sbr.rel (0) target = $region5
    $region4: #{tpu_custom_call.1} parent=1 // pred_region
      %s13 = ssub.s32 2048, 2048
      %14 = vsyncadd [#allocation3], %s13
      %s15 = sshll.u32 [#allocation2], 4
      %s16 = int_to_ptr.vmem [resolvable:$true] %s15
      %21 = dma.hbm_to_vmem [thread:$0]  %s0, 2048, %s16, [#allocation3], 128, 128, 8
    $region5: #{tpu_custom_call.1} parent=1 // pred_fallthru
      _
    // Predicated region
    $region6: #{tpu_custom_call.1} parent=1 // pred_check
      _
    $region7: #{tpu_custom_call.1} parent=1 // pred_check_branch
      %23 = sbr.rel (0) target = $region9
    $region8: #{tpu_custom_call.1} parent=1 // pred_region
      %s25 = ssub.s32 8192, 8192
      %26 = vsyncadd [#allocation6], %s25
      %s27 = sshll.u32 [#allocation5], 4
      %s28 = int_to_ptr.vmem [resolvable:$true] %s27
      %33 = dma.hbm_to_vmem [thread:$0]  %s1, 8192, %s28, [#allocation6], 512, 512, 32
    $region9: #{tpu_custom_call.1} parent=1 // pred_fallthru
      _
    // Predicated region
    $region10: #{tpu_custom_call.1} parent=1 // pred_check
      _
    $region11: #{tpu_custom_call.1} parent=1 // pred_check_branch
      %35 = sbr.rel (0) target = $region13
    $region12: #{tpu_custom_call.1} parent=1 // pred_region
      %36 = dma.done [#allocation3], 2048
    $region13: #{tpu_custom_call.1} parent=1 // pred_fallthru
      _
    // Predicated region
    $region14: #{tpu_custom_call.1} parent=1 // pred_check
      _
    $region15: #{tpu_custom_call.1} parent=1 // pred_check_branch
      %38 = sbr.rel (0) target = $region17
    $region16: #{tpu_custom_call.1} parent=1 // pred_region
      %39 = dma.done [#allocation6], 8192
    $region17: #{tpu_custom_call.1} parent=1 // pred_fallthru
      _
    %v40 = vld [vmem:[#allocation2] sm:$0xff]
    %v41 = vld [vmem:[#allocation2 + $0x8] sm:$0xff]
    %v42 = vld [vmem:[#allocation2 + $0x10] sm:$0xff]
    %v43 = vld [vmem:[#allocation2 + $0x18] sm:$0xff]
    %v44 = vld [vmem:[#allocation2 + $0x20] sm:$0xff]
    %v45 = vld [vmem:[#allocation2 + $0x28] sm:$0xff]
    %v46 = vld [vmem:[#allocation2 + $0x30] sm:$0xff]
    %v47 = vld [vmem:[#allocation2 + $0x38] sm:$0xff]
    %v48 = vld [vmem:[#allocation2 + $0x40] sm:$0xff]
    %v49 = vld [vmem:[#allocation2 + $0x48] sm:$0xff]
    %v50 = vld [vmem:[#allocation2 + $0x50] sm:$0xff]
    %v51 = vld [vmem:[#allocation2 + $0x58] sm:$0xff]
    %v52 = vld [vmem:[#allocation2 + $0x60] sm:$0xff]
    %v53 = vld [vmem:[#allocation2 + $0x68] sm:$0xff]
    %v54 = vld [vmem:[#allocation2 + $0x70] sm:$0xff]
    %v55 = vld [vmem:[#allocation2 + $0x78] sm:$0xff]
    %v56 = vld [vmem:[#allocation5] sm:$0xff]
    %v57 = vld [vmem:[#allocation5 + $0x8] sm:$0xff]
    %v58 = vld [vmem:[#allocation5 + $0x10] sm:$0xff]
    %v59 = vld [vmem:[#allocation5 + $0x18] sm:$0xff]
    %v60 = vld [vmem:[#allocation5 + $0x20] sm:$0xff]
    %v61 = vld [vmem:[#allocation5 + $0x28] sm:$0xff]
    %v62 = vld [vmem:[#allocation5 + $0x30] sm:$0xff]
    %v63 = vld [vmem:[#allocation5 + $0x38] sm:$0xff]
    %v64 = vld [vmem:[#allocation5 + $0x40] sm:$0xff]
    %v65 = vld [vmem:[#allocation5 + $0x48] sm:$0xff]
    %v66 = vld [vmem:[#allocation5 + $0x50] sm:$0xff]
    %v67 = vld [vmem:[#allocation5 + $0x58] sm:$0xff]
    %v68 = vld [vmem:[#allocation5 + $0x60] sm:$0xff]
    %v69 = vld [vmem:[#allocation5 + $0x68] sm:$0xff]
    %v70 = vld [vmem:[#allocation5 + $0x70] sm:$0xff]
    %v71 = vld [vmem:[#allocation5 + $0x78] sm:$0xff]
    %v72 = vld [vmem:[#allocation5 + $0x80] sm:$0xff]
    %v73 = vld [vmem:[#allocation5 + $0x88] sm:$0xff]
    %v74 = vld [vmem:[#allocation5 + $0x90] sm:$0xff]
    %v75 = vld [vmem:[#allocation5 + $0x98] sm:$0xff]
    %v76 = vld [vmem:[#allocation5 + $0xa0] sm:$0xff]
    %v77 = vld [vmem:[#allocation5 + $0xa8] sm:$0xff]
    %v78 = vld [vmem:[#allocation5 + $0xb0] sm:$0xff]
    %v79 = vld [vmem:[#allocation5 + $0xb8] sm:$0xff]
    %v80 = vld [vmem:[#allocation5 + $0xc0] sm:$0xff]
    %v81 = vld [vmem:[#allocation5 + $0xc8] sm:$0xff]
    %v82 = vld [vmem:[#allocation5 + $0xd0] sm:$0xff]
    %v83 = vld [vmem:[#allocation5 + $0xd8] sm:$0xff]
    %v84 = vld [vmem:[#allocation5 + $0xe0] sm:$0xff]
    %v85 = vld [vmem:[#allocation5 + $0xe8] sm:$0xff]
    %v86 = vld [vmem:[#allocation5 + $0xf0] sm:$0xff]
    %v87 = vld [vmem:[#allocation5 + $0xf8] sm:$0xff]
    %v88 = vld [vmem:[#allocation5 + $0x100] sm:$0xff]
    %v89 = vld [vmem:[#allocation5 + $0x108] sm:$0xff]
    %v90 = vld [vmem:[#allocation5 + $0x110] sm:$0xff]
    %v91 = vld [vmem:[#allocation5 + $0x118] sm:$0xff]
    %v92 = vld [vmem:[#allocation5 + $0x120] sm:$0xff]
    %v93 = vld [vmem:[#allocation5 + $0x128] sm:$0xff]
    %v94 = vld [vmem:[#allocation5 + $0x130] sm:$0xff]
    %v95 = vld [vmem:[#allocation5 + $0x138] sm:$0xff]
    %v96 = vld [vmem:[#allocation5 + $0x140] sm:$0xff]
    %v97 = vld [vmem:[#allocation5 + $0x148] sm:$0xff]
    %v98 = vld [vmem:[#allocation5 + $0x150] sm:$0xff]
    %v99 = vld [vmem:[#allocation5 + $0x158] sm:$0xff]
    %v100 = vld [vmem:[#allocation5 + $0x160] sm:$0xff]
    %v101 = vld [vmem:[#allocation5 + $0x168] sm:$0xff]
    %v102 = vld [vmem:[#allocation5 + $0x170] sm:$0xff]
    %v103 = vld [vmem:[#allocation5 + $0x178] sm:$0xff]
    %v104 = vld [vmem:[#allocation5 + $0x180] sm:$0xff]
    %v105 = vld [vmem:[#allocation5 + $0x188] sm:$0xff]
    %v106 = vld [vmem:[#allocation5 + $0x190] sm:$0xff]
    %v107 = vld [vmem:[#allocation5 + $0x198] sm:$0xff]
    %v108 = vld [vmem:[#allocation5 + $0x1a0] sm:$0xff]
    %v109 = vld [vmem:[#allocation5 + $0x1a8] sm:$0xff]
    %v110 = vld [vmem:[#allocation5 + $0x1b0] sm:$0xff]
    %v111 = vld [vmem:[#allocation5 + $0x1b8] sm:$0xff]
    %v112 = vld [vmem:[#allocation5 + $0x1c0] sm:$0xff]
    %v113 = vld [vmem:[#allocation5 + $0x1c8] sm:$0xff]
    %v114 = vld [vmem:[#allocation5 + $0x1d0] sm:$0xff]
    %v115 = vld [vmem:[#allocation5 + $0x1d8] sm:$0xff]
    %v116 = vld [vmem:[#allocation5 + $0x1e0] sm:$0xff]
    %v117 = vld [vmem:[#allocation5 + $0x1e8] sm:$0xff]
    %v118 = vld [vmem:[#allocation5 + $0x1f0] sm:$0xff]
    %v119 = vld [vmem:[#allocation5 + $0x1f8] sm:$0xff]
    %120 = vmatprep.subr.mxu0 %v57
    %121 = vmatpush1.msra.mxu0 %v56
    %122 = vmatprep.subr.mxu0 %v61
    %123 = vmatpush1.msra.mxu0 %v60
    %124 = vmatprep.subr.mxu0 %v65
    %125 = vmatpush1.msra.mxu0 %v64
    %126 = vmatprep.subr.mxu0 %v69
    %127 = vmatpush1.msra.mxu0 %v68
    %128 = vmatprep.subr.mxu0 %v73
    %129 = vmatpush1.msra.mxu0 %v72
    %130 = vmatprep.subr.mxu0 %v77
    %131 = vmatpush1.msra.mxu0 %v76
    %132 = vmatprep.subr.mxu0 %v81
    %133 = vmatpush1.msra.mxu0 %v80
    %134 = vmatprep.subr.mxu0 %v85
    %135 = vmatpush1.msra.mxu0 %v84
    %136 = vmatprep.subr.mxu0 %v89
    %137 = vmatpush1.msra.mxu0 %v88
    %138 = vmatprep.subr.mxu0 %v93
    %139 = vmatpush1.msra.mxu0 %v92
    %140 = vmatprep.subr.mxu0 %v97
    %141 = vmatpush1.msra.mxu0 %v96
    %142 = vmatprep.subr.mxu0 %v101
    %143 = vmatpush1.msra.mxu0 %v100
    %144 = vmatprep.subr.mxu0 %v105
    %145 = vmatpush1.msra.mxu0 %v104
    %146 = vmatprep.subr.mxu0 %v109
    %147 = vmatpush1.msra.mxu0 %v108
    %148 = vmatprep.subr.mxu0 %v113
    %149 = vmatpush1.msra.mxu0 %v112
    %150 = vmatprep.subr.mxu0 %v117
    %151 = vmatpush1.msra.mxu0 %v116
    %152 = vmatprep.subr.mxu0 0.0
    %153 = vmatpush1.msra.mxu0 0.0
    %154 = vmatprep.subr.mxu0 0.0
    %155 = vmatpush1.msra.mxu0 0.0
    %156 = vmatprep.subr.mxu0 0.0
    %157 = vmatpush1.msra.mxu0 0.0
    %158 = vmatprep.subr.mxu0 0.0
    %159 = vmatpush1.msra.mxu0 0.0
    %160 = vmatprep.subr.mxu0 0.0
    %161 = vmatpush1.msra.mxu0 0.0
    %162 = vmatprep.subr.mxu0 0.0
    %163 = vmatpush1.msra.mxu0 0.0
    %164 = vmatprep.subr.mxu0 0.0
    %165 = vmatpush1.msra.mxu0 0.0
    %166 = vmatprep.subr.mxu0 0.0
    %167 = vmatpush1.msra.mxu0 0.0
    %168 = vmatprep.subr.mxu0 0.0
    %169 = vmatpush1.msra.mxu0 0.0
    %170 = vmatprep.subr.mxu0 0.0
    %171 = vmatpush1.msra.mxu0 0.0
    %172 = vmatprep.subr.mxu0 0.0
    %173 = vmatpush1.msra.mxu0 0.0
    %174 = vmatprep.subr.mxu0 0.0
    %175 = vmatpush1.msra.mxu0 0.0
    %176 = vmatprep.subr.mxu0 0.0
    %177 = vmatpush1.msra.mxu0 0.0
    %178 = vmatprep.subr.mxu0 0.0
    %179 = vmatpush1.msra.mxu0 0.0
    %180 = vmatprep.subr.mxu0 0.0
    %181 = vmatpush1.msra.mxu0 0.0
    %182 = vmatprep.subr.mxu0 0.0
    %183 = vmatpush1.msra.mxu0 0.0
    %184 = vmatprep.mubr.f32.mxu0 0.0
    %185 = vmatmul.mubr.f32.gmra.mrb[0].mxu0 %v40
    %v186 = vpop.f32.mrb[0].mxu0
    %v187 = vadd.f32 0.0, %v186
    %v188 = vpop.f32.mrb[0].mxu0
    %v189 = vadd.f32 0.0, %v188
    %190 = vmatprep.mubr.f32.mxu0 0.0
    %191 = vmatmul.mubr.f32.gmra.mrb[0].mxu0 %v41
    %v192 = vpop.f32.mrb[0].mxu0
    %v193 = vadd.f32 0.0, %v192
    %v194 = vpop.f32.mrb[0].mxu0
    %v195 = vadd.f32 0.0, %v194
    %196 = vmatprep.mubr.f32.mxu0 0.0
    %197 = vmatmul.mubr.f32.gmra.mrb[0].mxu0 %v42
    %v198 = vpop.f32.mrb[0].mxu0
    %v199 = vadd.f32 0.0, %v198
    %v200 = vpop.f32.mrb[0].mxu0
    %v201 = vadd.f32 0.0, %v200
    %202 = vmatprep.mubr.f32.mxu0 0.0
    %203 = vmatmul.mubr.f32.gmra.mrb[0].mxu0 %v43
    %v204 = vpop.f32.mrb[0].mxu0
    %v205 = vadd.f32 0.0, %v204
    %v206 = vpop.f32.mrb[0].mxu0
    %v207 = vadd.f32 0.0, %v206
    %208 = vmatprep.mubr.f32.mxu0 0.0
    %209 = vmatmul.mubr.f32.gmra.mrb[0].mxu0 %v44
    %v210 = vpop.f32.mrb[0].mxu0
    %v211 = vadd.f32 0.0, %v210
    %v212 = vpop.f32.mrb[0].mxu0
    %v213 = vadd.f32 0.0, %v212
    %214 = vmatprep.mubr.f32.mxu0 0.0
    %215 = vmatmul.mubr.f32.gmra.mrb[0].mxu0 %v45
    %v216 = vpop.f32.mrb[0].mxu0
    %v217 = vadd.f32 0.0, %v216
    %v218 = vpop.f32.mrb[0].mxu0
    %v219 = vadd.f32 0.0, %v218
    %220 = vmatprep.mubr.f32.mxu0 0.0
    %221 = vmatmul.mubr.f32.gmra.mrb[0].mxu0 %v46
    %v222 = vpop.f32.mrb[0].mxu0
    %v223 = vadd.f32 0.0, %v222
    %v224 = vpop.f32.mrb[0].mxu0
    %v225 = vadd.f32 0.0, %v224
    %226 = vmatprep.mubr.f32.mxu0 0.0
    %227 = vmatmul.mubr.f32.gmra.mrb[0].mxu0 %v47
    %v228 = vpop.f32.mrb[0].mxu0
    %v229 = vadd.f32 0.0, %v228
    %v230 = vpop.f32.mrb[0].mxu0
    %v231 = vadd.f32 0.0, %v230
    %232 = vmatprep.mubr.f32.mxu0 0.0
    %233 = vmatmul.mubr.f32.gmra.mrb[0].mxu0 %v48
    %v234 = vpop.f32.mrb[0].mxu0
    %v235 = vadd.f32 0.0, %v234
    %v236 = vpop.f32.mrb[0].mxu0
    %v237 = vadd.f32 0.0, %v236
    %238 = vmatprep.mubr.f32.mxu0 0.0
    %239 = vmatmul.mubr.f32.gmra.mrb[0].mxu0 %v49
    %v240 = vpop.f32.mrb[0].mxu0
    %v241 = vadd.f32 0.0, %v240
    %v242 = vpop.f32.mrb[0].mxu0
    %v243 = vadd.f32 0.0, %v242
    %244 = vmatprep.mubr.f32.mxu0 0.0
    %245 = vmatmul.mubr.f32.gmra.mrb[0].mxu0 %v50
    %v246 = vpop.f32.mrb[0].mxu0
    %v247 = vadd.f32 0.0, %v246
    %v248 = vpop.f32.mrb[0].mxu0
    %v249 = vadd.f32 0.0, %v248
    %250 = vmatprep.mubr.f32.mxu0 0.0
    %251 = vmatmul.mubr.f32.gmra.mrb[0].mxu0 %v51
    %v252 = vpop.f32.mrb[0].mxu0
    %v253 = vadd.f32 0.0, %v252
    %v254 = vpop.f32.mrb[0].mxu0
    %v255 = vadd.f32 0.0, %v254
    %256 = vmatprep.mubr.f32.mxu0 0.0
    %257 = vmatmul.mubr.f32.gmra.mrb[0].mxu0 %v52
    %v258 = vpop.f32.mrb[0].mxu0
    %v259 = vadd.f32 0.0, %v258
    %v260 = vpop.f32.mrb[0].mxu0
    %v261 = vadd.f32 0.0, %v260
    %262 = vmatprep.mubr.f32.mxu0 0.0
    %263 = vmatmul.mubr.f32.gmra.mrb[0].mxu0 %v53
    %v264 = vpop.f32.mrb[0].mxu0
    %v265 = vadd.f32 0.0, %v264
    %v266 = vpop.f32.mrb[0].mxu0
    %v267 = vadd.f32 0.0, %v266
    %268 = vmatprep.mubr.f32.mxu0 0.0
    %269 = vmatmul.mubr.f32.gmra.mrb[0].mxu0 %v54
    %v270 = vpop.f32.mrb[0].mxu0
    %v271 = vadd.f32 0.0, %v270
    %v272 = vpop.f32.mrb[0].mxu0
    %v273 = vadd.f32 0.0, %v272
    %274 = vmatprep.mubr.f32.mxu0 0.0
    %275 = vmatmul.mubr.f32.gmra.mrb[0].mxu0 %v55
    %v276 = vpop.f32.mrb[0].mxu0
    %v277 = vadd.f32 0.0, %v276
    %v278 = vpop.f32.mrb[0].mxu0
    %v279 = vadd.f32 0.0, %v278
    %280 = vdwg.mxu0
    %281 = vmatprep.subr.mxu0 %v59
    %282 = vmatpush1.msra.mxu0 %v58
    %283 = vmatprep.subr.mxu0 %v63
    %284 = vmatpush1.msra.mxu0 %v62
    %285 = vmatprep.subr.mxu0 %v67
    %286 = vmatpush1.msra.mxu0 %v66
    %287 = vmatprep.subr.mxu0 %v71
    %288 = vmatpush1.msra.mxu0 %v70
    %289 = vmatprep.subr.mxu0 %v75
    %290 = vmatpush1.msra.mxu0 %v74
    %291 = vmatprep.subr.mxu0 %v79
    %292 = vmatpush1.msra.mxu0 %v78
    %293 = vmatprep.subr.mxu0 %v83
    %294 = vmatpush1.msra.mxu0 %v82
    %295 = vmatprep.subr.mxu0 %v87
    %296 = vmatpush1.msra.mxu0 %v86
    %297 = vmatprep.subr.mxu0 %v91
    %298 = vmatpush1.msra.mxu0 %v90
    %299 = vmatprep.subr.mxu0 %v95
    %300 = vmatpush1.msra.mxu0 %v94
    %301 = vmatprep.subr.mxu0 %v99
    %302 = vmatpush1.msra.mxu0 %v98
    %303 = vmatprep.subr.mxu0 %v103
    %304 = vmatpush1.msra.mxu0 %v102
    %305 = vmatprep.subr.mxu0 %v107
    %306 = vmatpush1.msra.mxu0 %v106
    %307 = vmatprep.subr.mxu0 %v111
    %308 = vmatpush1.msra.mxu0 %v110
    %309 = vmatprep.subr.mxu0 %v115
    %310 = vmatpush1.msra.mxu0 %v114
    %311 = vmatprep.subr.mxu0 %v119
    %312 = vmatpush1.msra.mxu0 %v118
    %313 = vmatprep.subr.mxu0 0.0
    %314 = vmatpush1.msra.mxu0 0.0
    %315 = vmatprep.subr.mxu0 0.0
    %316 = vmatpush1.msra.mxu0 0.0
    %317 = vmatprep.subr.mxu0 0.0
    %318 = vmatpush1.msra.mxu0 0.0
    %319 = vmatprep.subr.mxu0 0.0
    %320 = vmatpush1.msra.mxu0 0.0
    %321 = vmatprep.subr.mxu0 0.0
    %322 = vmatpush1.msra.mxu0 0.0
    %323 = vmatprep.subr.mxu0 0.0
    %324 = vmatpush1.msra.mxu0 0.0
    %325 = vmatprep.subr.mxu0 0.0
    %326 = vmatpush1.msra.mxu0 0.0
    %327 = vmatprep.subr.mxu0 0.0
    %328 = vmatpush1.msra.mxu0 0.0
    %329 = vmatprep.subr.mxu0 0.0
    %330 = vmatpush1.msra.mxu0 0.0
    %331 = vmatprep.subr.mxu0 0.0
    %332 = vmatpush1.msra.mxu0 0.0
    %333 = vmatprep.subr.mxu0 0.0
    %334 = vmatpush1.msra.mxu0 0.0
    %335 = vmatprep.subr.mxu0 0.0
    %336 = vmatpush1.msra.mxu0 0.0
    %337 = vmatprep.subr.mxu0 0.0
    %338 = vmatpush1.msra.mxu0 0.0
    %339 = vmatprep.subr.mxu0 0.0
    %340 = vmatpush1.msra.mxu0 0.0
    %341 = vmatprep.subr.mxu0 0.0
    %342 = vmatpush1.msra.mxu0 0.0
    %343 = vmatprep.subr.mxu0 0.0
    %344 = vmatpush1.msra.mxu0 0.0
    %345 = vmatprep.mubr.f32.mxu0 0.0
    %346 = vmatmul.mubr.f32.gmra.mrb[0].mxu0 %v40
    %v347 = vpop.f32.mrb[0].mxu0
    %v348 = vadd.f32 0.0, %v347
    %v349 = vpop.f32.mrb[0].mxu0
    %v350 = vadd.f32 0.0, %v349
    %351 = vmatprep.mubr.f32.mxu0 0.0
    %352 = vmatmul.mubr.f32.gmra.mrb[0].mxu0 %v41
    %v353 = vpop.f32.mrb[0].mxu0
    %v354 = vadd.f32 0.0, %v353
    %v355 = vpop.f32.mrb[0].mxu0
    %v356 = vadd.f32 0.0, %v355
    %357 = vmatprep.mubr.f32.mxu0 0.0
    %358 = vmatmul.mubr.f32.gmra.mrb[0].mxu0 %v42
    %v359 = vpop.f32.mrb[0].mxu0
    %v360 = vadd.f32 0.0, %v359
    %v361 = vpop.f32.mrb[0].mxu0
    %v362 = vadd.f32 0.0, %v361
    %363 = vmatprep.mubr.f32.mxu0 0.0
    %364 = vmatmul.mubr.f32.gmra.mrb[0].mxu0 %v43
    %v365 = vpop.f32.mrb[0].mxu0
    %v366 = vadd.f32 0.0, %v365
    %v367 = vpop.f32.mrb[0].mxu0
    %v368 = vadd.f32 0.0, %v367
    %369 = vmatprep.mubr.f32.mxu0 0.0
    %370 = vmatmul.mubr.f32.gmra.mrb[0].mxu0 %v44
    %v371 = vpop.f32.mrb[0].mxu0
    %v372 = vadd.f32 0.0, %v371
    %v373 = vpop.f32.mrb[0].mxu0
    %v374 = vadd.f32 0.0, %v373
    %375 = vmatprep.mubr.f32.mxu0 0.0
    %376 = vmatmul.mubr.f32.gmra.mrb[0].mxu0 %v45
    %v377 = vpop.f32.mrb[0].mxu0
    %v378 = vadd.f32 0.0, %v377
    %v379 = vpop.f32.mrb[0].mxu0
    %v380 = vadd.f32 0.0, %v379
    %381 = vmatprep.mubr.f32.mxu0 0.0
    %382 = vmatmul.mubr.f32.gmra.mrb[0].mxu0 %v46
    %v383 = vpop.f32.mrb[0].mxu0
    %v384 = vadd.f32 0.0, %v383
    %v385 = vpop.f32.mrb[0].mxu0
    %v386 = vadd.f32 0.0, %v385
    %387 = vmatprep.mubr.f32.mxu0 0.0
    %388 = vmatmul.mubr.f32.gmra.mrb[0].mxu0 %v47
    %v389 = vpop.f32.mrb[0].mxu0
    %v390 = vadd.f32 0.0, %v389
    %v391 = vpop.f32.mrb[0].mxu0
    %v392 = vadd.f32 0.0, %v391
    %393 = vmatprep.mubr.f32.mxu0 0.0
    %394 = vmatmul.mubr.f32.gmra.mrb[0].mxu0 %v48
    %v395 = vpop.f32.mrb[0].mxu0
    %v396 = vadd.f32 0.0, %v395
    %v397 = vpop.f32.mrb[0].mxu0
    %v398 = vadd.f32 0.0, %v397
    %399 = vmatprep.mubr.f32.mxu0 0.0
    %400 = vmatmul.mubr.f32.gmra.mrb[0].mxu0 %v49
    %v401 = vpop.f32.mrb[0].mxu0
    %v402 = vadd.f32 0.0, %v401
    %v403 = vpop.f32.mrb[0].mxu0
    %v404 = vadd.f32 0.0, %v403
    %405 = vmatprep.mubr.f32.mxu0 0.0
    %406 = vmatmul.mubr.f32.gmra.mrb[0].mxu0 %v50
    %v407 = vpop.f32.mrb[0].mxu0
    %v408 = vadd.f32 0.0, %v407
    %v409 = vpop.f32.mrb[0].mxu0
    %v410 = vadd.f32 0.0, %v409
    %411 = vmatprep.mubr.f32.mxu0 0.0
    %412 = vmatmul.mubr.f32.gmra.mrb[0].mxu0 %v51
    %v413 = vpop.f32.mrb[0].mxu0
    %v414 = vadd.f32 0.0, %v413
    %v415 = vpop.f32.mrb[0].mxu0
    %v416 = vadd.f32 0.0, %v415
    %417 = vmatprep.mubr.f32.mxu0 0.0
    %418 = vmatmul.mubr.f32.gmra.mrb[0].mxu0 %v52
    %v419 = vpop.f32.mrb[0].mxu0
    %v420 = vadd.f32 0.0, %v419
    %v421 = vpop.f32.mrb[0].mxu0
    %v422 = vadd.f32 0.0, %v421
    %423 = vmatprep.mubr.f32.mxu0 0.0
    %424 = vmatmul.mubr.f32.gmra.mrb[0].mxu0 %v53
    %v425 = vpop.f32.mrb[0].mxu0
    %v426 = vadd.f32 0.0, %v425
    %v427 = vpop.f32.mrb[0].mxu0
    %v428 = vadd.f32 0.0, %v427
    %429 = vmatprep.mubr.f32.mxu0 0.0
    %430 = vmatmul.mubr.f32.gmra.mrb[0].mxu0 %v54
    %v431 = vpop.f32.mrb[0].mxu0
    %v432 = vadd.f32 0.0, %v431
    %v433 = vpop.f32.mrb[0].mxu0
    %v434 = vadd.f32 0.0, %v433
    %435 = vmatprep.mubr.f32.mxu0 0.0
    %436 = vmatmul.mubr.f32.gmra.mrb[0].mxu0 %v55
    %v437 = vpop.f32.mrb[0].mxu0
    %v438 = vadd.f32 0.0, %v437
    %v439 = vpop.f32.mrb[0].mxu0
    %v440 = vadd.f32 0.0, %v439
    %441 = vdwg.mxu0
    %442 = vst [vmem:[#allocation7] sm:$0xff] %v187
    %443 = vst [vmem:[#allocation7 + $0x8] sm:$0xff] %v189
    %444 = vst [vmem:[#allocation7 + $0x10] sm:$0xff] %v348
    %445 = vst [vmem:[#allocation7 + $0x18] sm:$0xff] %v350
    %446 = vst [vmem:[#allocation7 + $0x20] sm:$0xff] %v193
    %447 = vst [vmem:[#allocation7 + $0x28] sm:$0xff] %v195
    %448 = vst [vmem:[#allocation7 + $0x30] sm:$0xff] %v354
    %449 = vst [vmem:[#allocation7 + $0x38] sm:$0xff] %v356
    %450 = vst [vmem:[#allocation7 + $0x40] sm:$0xff] %v199
    %451 = vst [vmem:[#allocation7 + $0x48] sm:$0xff] %v201
    %452 = vst [vmem:[#allocation7 + $0x50] sm:$0xff] %v360
    %453 = vst [vmem:[#allocation7 + $0x58] sm:$0xff] %v362
    %454 = vst [vmem:[#allocation7 + $0x60] sm:$0xff] %v205
    %455 = vst [vmem:[#allocation7 + $0x68] sm:$0xff] %v207
    %456 = vst [vmem:[#allocation7 + $0x70] sm:$0xff] %v366
    %457 = vst [vmem:[#allocation7 + $0x78] sm:$0xff] %v368
    %458 = vst [vmem:[#allocation7 + $0x80] sm:$0xff] %v211
    %459 = vst [vmem:[#allocation7 + $0x88] sm:$0xff] %v213
    %460 = vst [vmem:[#allocation7 + $0x90] sm:$0xff] %v372
    %461 = vst [vmem:[#allocation7 + $0x98] sm:$0xff] %v374
    %462 = vst [vmem:[#allocation7 + $0xa0] sm:$0xff] %v217
    %463 = vst [vmem:[#allocation7 + $0xa8] sm:$0xff] %v219
    %464 = vst [vmem:[#allocation7 + $0xb0] sm:$0xff] %v378
    %465 = vst [vmem:[#allocation7 + $0xb8] sm:$0xff] %v380
    %466 = vst [vmem:[#allocation7 + $0xc0] sm:$0xff] %v223
    %467 = vst [vmem:[#allocation7 + $0xc8] sm:$0xff] %v225
    %468 = vst [vmem:[#allocation7 + $0xd0] sm:$0xff] %v384
    %469 = vst [vmem:[#allocation7 + $0xd8] sm:$0xff] %v386
    %470 = vst [vmem:[#allocation7 + $0xe0] sm:$0xff] %v229
    %471 = vst [vmem:[#allocation7 + $0xe8] sm:$0xff] %v231
    %472 = vst [vmem:[#allocation7 + $0xf0] sm:$0xff] %v390
    %473 = vst [vmem:[#allocation7 + $0xf8] sm:$0xff] %v392
    %474 = vst [vmem:[#allocation7 + $0x100] sm:$0xff] %v235
    %475 = vst [vmem:[#allocation7 + $0x108] sm:$0xff] %v237
    %476 = vst [vmem:[#allocation7 + $0x110] sm:$0xff] %v396
    %477 = vst [vmem:[#allocation7 + $0x118] sm:$0xff] %v398
    %478 = vst [vmem:[#allocation7 + $0x120] sm:$0xff] %v241
    %479 = vst [vmem:[#allocation7 + $0x128] sm:$0xff] %v243
    %480 = vst [vmem:[#allocation7 + $0x130] sm:$0xff] %v402
    %481 = vst [vmem:[#allocation7 + $0x138] sm:$0xff] %v404
    %482 = vst [vmem:[#allocation7 + $0x140] sm:$0xff] %v247
    %483 = vst [vmem:[#allocation7 + $0x148] sm:$0xff] %v249
    %484 = vst [vmem:[#allocation7 + $0x150] sm:$0xff] %v408
    %485 = vst [vmem:[#allocation7 + $0x158] sm:$0xff] %v410
    %486 = vst [vmem:[#allocation7 + $0x160] sm:$0xff] %v253
    %487 = vst [vmem:[#allocation7 + $0x168] sm:$0xff] %v255
    %488 = vst [vmem:[#allocation7 + $0x170] sm:$0xff] %v414
    %489 = vst [vmem:[#allocation7 + $0x178] sm:$0xff] %v416
    %490 = vst [vmem:[#allocation7 + $0x180] sm:$0xff] %v259
    %491 = vst [vmem:[#allocation7 + $0x188] sm:$0xff] %v261
    %492 = vst [vmem:[#allocation7 + $0x190] sm:$0xff] %v420
    %493 = vst [vmem:[#allocation7 + $0x198] sm:$0xff] %v422
    %494 = vst [vmem:[#allocation7 + $0x1a0] sm:$0xff] %v265
    %495 = vst [vmem:[#allocation7 + $0x1a8] sm:$0xff] %v267
    %496 = vst [vmem:[#allocation7 + $0x1b0] sm:$0xff] %v426
    %497 = vst [vmem:[#allocation7 + $0x1b8] sm:$0xff] %v428
    %498 = vst [vmem:[#allocation7 + $0x1c0] sm:$0xff] %v271
    %499 = vst [vmem:[#allocation7 + $0x1c8] sm:$0xff] %v273
    %500 = vst [vmem:[#allocation7 + $0x1d0] sm:$0xff] %v432
    %501 = vst [vmem:[#allocation7 + $0x1d8] sm:$0xff] %v434
    %502 = vst [vmem:[#allocation7 + $0x1e0] sm:$0xff] %v277
    %503 = vst [vmem:[#allocation7 + $0x1e8] sm:$0xff] %v279
    %504 = vst [vmem:[#allocation7 + $0x1f0] sm:$0xff] %v438
    %505 = vst [vmem:[#allocation7 + $0x1f8] sm:$0xff] %v440
    // Predicated region
    $region18: #{tpu_custom_call.1} parent=1 // pred_check
      _
    $region19: #{tpu_custom_call.1} parent=1 // pred_check_branch
      %507 = sbr.rel (0) target = $region21
    $region20: #{tpu_custom_call.1} parent=1 // pred_region
      %s509 = ssub.s32 8192, 8192
      %510 = vsyncadd [#allocation4], %s509
      %s511 = sshll.u32 [#allocation7], 4
      %s512 = int_to_ptr.vmem [resolvable:$true] %s511
      %517 = dma.vmem_to_hbm [thread:$0]  %s512, 8192, %s2, [#allocation4], 512, 512, 32
    $region21: #{tpu_custom_call.1} parent=1 // pred_fallthru
      _
    // Predicated region
    $region22: #{tpu_custom_call.1} parent=1 // pred_check
      _
    $region23: #{tpu_custom_call.1} parent=1 // pred_check_branch
      %519 = sbr.rel (0) target = $region25
    $region24: #{tpu_custom_call.1} parent=1 // pred_region
      %520 = dma.done [#allocation4], 8192
    $region25: #{tpu_custom_call.1} parent=1 // pred_fallthru
      _
    %521 = vsyncpa [#allocation3], 1
    %522 = vsyncpa [#allocation6], 1
    %523 = vsyncpa [#allocation4], 1

</llo_original>
